<compile_context>
chip_gen: v7x
topology: tpu7x:2x2x1
jax: 0.10.0
libtpu: 0.0.40
codegen_flags: <defaults>
</compile_context>

<pallas_src>
from math import factorial, sqrt

import numpy as np
import jax
import jax.numpy as jnp
from jax.experimental import pallas as pl
from jax.experimental.pallas import tpu as pltpu


# ----------------------------------------------------------------------------
# Deterministic construction of the sparse real Clebsch-Gordan buffers
# (mirrors coo_CG / extract_batch_ptr in the PyTorch module's __init__).
# ----------------------------------------------------------------------------
def _wigner_3j(j1, j2, j3, m1, m2, m3):
    if m1 + m2 + m3 != 0:
        return 0.0
    if not (abs(j1 - j2) <= j3 <= j1 + j2):
        return 0.0
    if abs(m1) > j1 or abs(m2) > j2 or abs(m3) > j3:
        return 0.0
    f = factorial
    delta = sqrt(f(j1 + j2 - j3) * f(j1 - j2 + j3) * f(-j1 + j2 + j3) / f(j1 + j2 + j3 + 1))
    pref = sqrt(f(j1 + m1) * f(j1 - m1) * f(j2 + m2) * f(j2 - m2) * f(j3 + m3) * f(j3 - m3))
    kmin = max(0, j2 - j3 - m1, j1 + m2 - j3)
    kmax = min(j1 + j2 - j3, j1 - m1, j2 + m2)
    if kmax < kmin:
        return 0.0
    s = 0.0
    for k in range(kmin, kmax + 1):
        s += (-1) ** k / (
            f(k) * f(j1 + j2 - j3 - k) * f(j1 - m1 - k) * f(j2 + m2 - k)
            * f(j3 - j2 + m1 + k) * f(j3 - j1 - m2 + k)
        )
    return (-1) ** (j1 - j2 - m3) * delta * pref * s


def _cg_complex(j1, m1, j2, m2, j3, m3):
    # <j1 m1 j2 m2 | j3 m3>
    return (-1) ** (j1 - j2 + m3) * sqrt(2 * j3 + 1) * _wigner_3j(j1, j2, j3, m1, m2, -m3)


def _real_U(l):
    """Unitary matrix mapping complex SH (index mu) -> real SH (index m)."""
    U = np.zeros((2 * l + 1, 2 * l + 1), dtype=np.complex128)
    for m in range(-l, l + 1):
        i = m + l
        if m > 0:
            U[i, m + l] = (-1) ** m / sqrt(2.0)
            U[i, -m + l] = 1.0 / sqrt(2.0)
        elif m == 0:
            U[i, l] = 1.0
        else:
            am = -m
            U[i, m + l] = 1j / sqrt(2.0)
            U[i, am + l] = -1j * (-1) ** am / sqrt(2.0)
    return U


def _num_orders(L):
    lmin, lmax = L
    return (lmax + 1) ** 2 - lmin * lmin


def _coo_cg(L_out, L_in1, L_in2):
    """Returns (CG_vals, M_out, M1, M2) sorted by M_out (then M1, M2)."""
    lo_min, lo_max = L_out
    l1_min, l1_max = L_in1
    l2_min, l2_max = L_in2
    entries = []
    for l in range(lo_min, lo_max + 1):
        Ul = _real_U(l)
        for l1 in range(l1_min, l1_max + 1):
            U1 = _real_U(l1)
            for l2 in range(l2_min, l2_max + 1):
                if not (abs(l1 - l2) <= l <= l1 + l2):
                    continue
                U2 = _real_U(l2)
                for m in range(-l, l + 1):
                    for m1 in range(-l1, l1 + 1):
                        for m2 in range(-l2, l2 + 1):
                            q = 0.0 + 0.0j
                            for mu1 in range(-l1, l1 + 1):
                                for mu2 in range(-l2, l2 + 1):
                                    mu = mu1 + mu2
                                    if abs(mu) > l:
                                        continue
                                    c = _cg_complex(l1, mu1, l2, mu2, l, mu)
                                    if c == 0.0:
                                        continue
                                    q += (np.conj(Ul[m + l, mu + l])
                                          * U1[m1 + l1, mu1 + l1]
                                          * U2[m2 + l2, mu2 + l2] * c)
                            val = q.real if abs(q.real) >= abs(q.imag) else q.imag
                            if abs(val) > 1e-9:
                                Mo = (l * l - lo_min * lo_min) + (m + l)
                                Mi1 = (l1 * l1 - l1_min * l1_min) + (m1 + l1)
                                Mi2 = (l2 * l2 - l2_min * l2_min) + (m2 + l2)
                                entries.append((Mo, Mi1, Mi2, float(val)))
    entries.sort(key=lambda e: (e[0], e[1], e[2]))
    M_out = np.array([e[0] for e in entries], dtype=np.int32)
    M1 = np.array([e[1] for e in entries], dtype=np.int32)
    M2 = np.array([e[2] for e in entries], dtype=np.int32)
    CG_vals = np.array([e[3] for e in entries], dtype=np.float32)
    return CG_vals, M_out, M1, M2


# ----------------------------------------------------------------------------
# Pallas kernel (channel-wise tensor product hot path)
# ----------------------------------------------------------------------------
def _tp_cw_kernel(g1_ref, g2_ref, seg_ref, x1_ref, x2_ref, o_ref):
    # Gather via one-hot matmul on the MXU (exact for 0/1 matrices), elementwise
    # product on the VPU in f32 (v5e has no bf16 VALU path), and the CG-weighted
    # segment-sum as a second MXU matmul.  The lane dim of every RHS / output is
    # the folded (batch*channel) axis, so vregs and stores are lane-dense.
    x1g = jnp.dot(g1_ref[...], x1_ref[...], preferred_element_type=jnp.float32)  # (nnz, TL)
    x2g = jnp.dot(g2_ref[...], x2_ref[...], preferred_element_type=jnp.float32)  # (nnz, TL)
    inter = x1g * x2g                                                             # (nnz, TL) f32
    o_ref[...] = jnp.dot(seg_ref[...], inter,
                         preferred_element_type=jnp.float32).astype(o_ref.dtype)  # (Mo, TL)


def _round_up(v, m):
    return ((v + m - 1) // m) * m


def _choose_lane_tile(F, per_lane_bytes, budget_bytes=12 << 20, max_tl=8192, min_split=1024):
    """Pick the lane-tile width TL (multiple of 128 unless it equals F) and the
    padded lane extent.  Budget keeps double-buffered tiles + on-chip
    intermediates comfortably inside scoped VMEM on every TPU generation
    (v7x has only 64 MiB physical / 32 MiB scoped default)."""
    cap = int(max(128, min(max_tl, (budget_bytes // per_lane_bytes) // 128 * 128)))
    if F <= cap and F < min_split:
        return F, F                      # single full-width tile
    # keep at least 2 grid steps for megacore (2 TCs on v7x) when F is large
    tl = int(min(cap, max(128, _round_up(-(-F // 2), 128))))
    return tl, _round_up(F, tl)


def _tensor_product_cw_pallas(x1, x2, G1, G2, Seg):
    N, n1, C = x1.shape
    _, n2, _ = x2.shape
    no, nnz_pad = Seg.shape
    F = N * C
    cdt = G1.dtype                       # compute dtype of the gather matmuls
    in_isz = jnp.dtype(cdt).itemsize
    out_isz = jnp.dtype(x1.dtype).itemsize

    # Layout plumbing in the wrapper (not in-kernel): fold batch into the lane
    # dimension so every matmul RHS / output tile is (orders, N*C)-wide.
    x1t = jnp.transpose(x1, (1, 0, 2)).reshape(n1, F).astype(cdt)
    x2t = jnp.transpose(x2, (1, 0, 2)).reshape(n2, F).astype(cdt)

    # VMEM bytes consumed per lane of tile width: double-buffered in/out tiles
    # (sublane-padded) + the three (nnz_pad, TL) f32 intermediates on-chip.
    per_lane = (2 * (_round_up(n1, 8) + _round_up(n2, 8)) * in_isz
                + 2 * _round_up(no, 8) * 4
                + 3 * nnz_pad * 4)
    TL, F_pad = _choose_lane_tile(F, per_lane)
    if F_pad != F:
        # zero lanes flow through the matmuls as zeros and are sliced off below
        x1t = jnp.pad(x1t, ((0, 0), (0, F_pad - F)))
        x2t = jnp.pad(x2t, ((0, 0), (0, F_pad - F)))

    tile_bytes = TL * per_lane
    const_bytes = (2 * nnz_pad * (_round_up(n1, 128) + _round_up(n2, 128)) * in_isz
                   + 2 * _round_up(no, 8) * _round_up(nnz_pad, 128) * 4)
    vmem_limit = int(min(64 << 20, max(32 << 20, 2 * (tile_bytes + const_bytes))))

    flops = int((2 * (n1 + n2) + 2 * no + 1) * nnz_pad * F_pad)
    bytes_accessed = int((n1 + n2) * F_pad * in_isz + no * F_pad * out_isz
                         + nnz_pad * (n1 + n2) * in_isz + no * nnz_pad * 4)

    out2d = pl.pallas_call(
        _tp_cw_kernel,
        out_shape=jax.ShapeDtypeStruct((no, F_pad), x1.dtype),
        grid=(F_pad // TL,),
        in_specs=[
            # constant block index across the grid -> DMA'd once (no re-fetch)
            pl.BlockSpec((nnz_pad, n1), lambda i: (0, 0)),   # G1
            pl.BlockSpec((nnz_pad, n2), lambda i: (0, 0)),   # G2
            pl.BlockSpec((no, nnz_pad), lambda i: (0, 0)),   # SegCG
            pl.BlockSpec((n1, TL), lambda i: (0, i)),        # x1 lane tile
            pl.BlockSpec((n2, TL), lambda i: (0, i)),        # x2 lane tile
        ],
        out_specs=pl.BlockSpec((no, TL), lambda i: (0, i)),
        compiler_params=pltpu.CompilerParams(
            dimension_semantics=("parallel",),
            vmem_limit_bytes=vmem_limit),
        cost_estimate=pl.CostEstimate(flops=flops, transcendentals=0,
                                      bytes_accessed=bytes_accessed),
    )(G1, G2, Seg, x1t, x2t)

    # Un-fold: (no, N*C) -> (N, no, C)
    out = out2d[:, :F].reshape(no, N, C)
    return jnp.transpose(out, (1, 0, 2))


class TensorProduct:
    """JAX/Pallas port of equitorch.nn.TensorProduct (channel_wise=True)."""

    def __init__(self, L_in1, L_in2, L_out, channel_wise=True, compute_dtype=jnp.float32):
        self.L_in1, self.L_in2, self.L_out = L_in1, L_in2, L_out
        self.channel_wise = channel_wise
        if not channel_wise:
            # TODO(synk): channel_wise=False (pairwise C1 x C2 outer product) branch not implemented in Pallas.
            raise NotImplementedError("Only channel_wise=True is implemented.")

        CG_vals, M_out, M1, M2 = _coo_cg(L_out, L_in1, L_in2)
        n1 = _num_orders(L_in1)
        n2 = _num_orders(L_in2)
        no = _num_orders(L_out)
        nnz = CG_vals.shape[0]

        # Buffers mirroring the PyTorch module (M_ptr kept for fidelity).
        counts = np.bincount(M_out, minlength=no)
        self.M_ptr = np.concatenate([[0], np.cumsum(counts)]).astype(np.int32)
        self.M1, self.M2, self.M_out, self.CG_vals = M1, M2, M_out, CG_vals

        # Dense one-hot gather matrices and CG-weighted segment matrix, padded
        # along nnz to a multiple of 16 (sublane-clean for f32 and bf16).
        nnz_pad = max(16, _round_up(nnz, 16))
        G1 = np.zeros((nnz_pad, n1), dtype=np.float32)
        G2 = np.zeros((nnz_pad, n2), dtype=np.float32)
        Seg = np.zeros((no, nnz_pad), dtype=np.float32)
        G1[np.arange(nnz), M1] = 1.0
        G2[np.arange(nnz), M2] = 1.0
        Seg[M_out, np.arange(nnz)] = CG_vals
        # One-hot gathers are exact in bf16: pass compute_dtype=jnp.bfloat16 on
        # v6e/v7x to halve x1/x2 HBM traffic (Seg/CG + accumulation stay f32).
        self._G1 = jnp.asarray(G1).astype(compute_dtype)
        self._G2 = jnp.asarray(G2).astype(compute_dtype)
        self._Seg = jnp.asarray(Seg)
        self.num_orders_1, self.num_orders_2, self.num_orders_out = n1, n2, no
        self._fn = jax.jit(_tensor_product_cw_pallas)

    def __call__(self, x1, x2):
        # batch broadcasting (N=1 broadcasts), as documented in the module.
        N = max(x1.shape[0], x2.shape[0])
        # TODO(synk): the N=1 broadcast is materialized XLA-side; it could be folded
        # into the lane index arithmetic in-kernel to avoid the HBM copy.
        if x1.shape[0] != N:
            x1 = jnp.broadcast_to(x1, (N,) + x1.shape[1:])
        if x2.shape[0] != N:
            x2 = jnp.broadcast_to(x2, (N,) + x2.shape[1:])
        assert x1.shape[-1] == x2.shape[-1], "channel_wise requires C1 == C2"
        return self._fn(x1, x2, self._G1, self._G2, self._Seg)


# ----------------------------------------------------------------------------
# Reference (plain numpy) for verification
# ----------------------------------------------------------------------------
def _reference_cw(x1, x2, CG_vals, M1, M2, M_out, num_orders_out):
    x1g = x1[:, M1, :]
    x2g = x2[:, M2, :]
    inter = x1g * x2g * CG_vals[None, :, None]
    out = np.zeros((x1.shape[0], num_orders_out, x1.shape[-1]), dtype=np.float32)
    np.add.at(out, (slice(None), M_out, slice(None)), inter)
    return out


if __name__ == "__main__":
    L_in1 = (0, 2)   # num_orders_1 = 9
    L_in2 = (0, 2)   # num_orders_2 = 9
    L_out = (0, 2)   # num_orders_out = 9
    N, C = 4, 32     # folded lane width N*C = 128 (one full lane tile)

    tp = TensorProduct(L_in1, L_in2, L_out, channel_wise=True)

    key = jax.random.PRNGKey(0)
    k1, k2 = jax.random.split(key)
    x1 = jax.random.normal(k1, (N, tp.num_orders_1, C), dtype=jnp.float32)
    x2 = jax.random.normal(k2, (N, tp.num_orders_2, C), dtype=jnp.float32)

    out = tp(x1, x2)
    out = jax.block_until_ready(out)

    ref = _reference_cw(np.asarray(x1), np.asarray(x2),
                        tp.CG_vals, tp.M1, tp.M2, tp.M_out, tp.num_orders_out)
    assert out.shape == (N, tp.num_orders_out, C)
    assert np.allclose(np.asarray(out), ref, atol=1e-4, rtol=1e-4)

    print("KERNEL_OK")
</pallas_src>

<mosaic_0001>
module attributes {stable_mosaic.version = 11 : i64} {
  func.func @_tp_cw_kernel(%arg0: i32, %arg1: memref<144x9xf32, #tpu.memory_space<vmem>>, %arg2: memref<144x9xf32, #tpu.memory_space<vmem>>, %arg3: memref<9x144xf32, #tpu.memory_space<vmem>>, %arg4: memref<9x128xf32, #tpu.memory_space<vmem>>, %arg5: memref<9x128xf32, #tpu.memory_space<vmem>>, %arg6: memref<9x128xf32, #tpu.memory_space<vmem>>) attributes {dimension_semantics = [#tpu.dimension_semantics<parallel>], iteration_bounds = array<i64: 1>, scalar_prefetch = 0 : i64, scratch_operands = 0 : i64, tpu.core_type = #tpu.core_type<tc>, window_params = [{pipeline_mode = #tpu.pipeline_mode<synchronous>, transform_indices = @transform_0, window_bounds = array<i64: 144, 9>}, {pipeline_mode = #tpu.pipeline_mode<synchronous>, transform_indices = @transform_1, window_bounds = array<i64: 144, 9>}, {pipeline_mode = #tpu.pipeline_mode<synchronous>, transform_indices = @transform_2, window_bounds = array<i64: 9, 144>}, {transform_indices = @transform_3, window_bounds = array<i64: 9, 128>}, {transform_indices = @transform_4, window_bounds = array<i64: 9, 128>}, {transform_indices = @transform_5, window_bounds = array<i64: 9, 128>}]} {
    %c0 = arith.constant 0 : index
    %c0_0 = arith.constant 0 : index
    %0 = vector.load %arg1[%c0, %c0_0] : memref<144x9xf32, #tpu.memory_space<vmem>>, vector<144x9xf32>
    %c0_1 = arith.constant 0 : index
    %c0_2 = arith.constant 0 : index
    %1 = vector.load %arg4[%c0_1, %c0_2] : memref<9x128xf32, #tpu.memory_space<vmem>>, vector<9x128xf32>
    %cst = arith.constant dense<0.000000e+00> : vector<144x128xf32>
    %2 = tpu.matmul %0, %1, %cst {dimension_numbers = #tpu.dot_dimension_numbers<[1], [0], [0], [1], [0, 0, 1, 1], [], []>} : vector<144x9xf32>, vector<9x128xf32>, vector<144x128xf32> -> vector<144x128xf32>
    %c0_3 = arith.constant 0 : index
    %c0_4 = arith.constant 0 : index
    %3 = vector.load %arg2[%c0_3, %c0_4] : memref<144x9xf32, #tpu.memory_space<vmem>>, vector<144x9xf32>
    %c0_5 = arith.constant 0 : index
    %c0_6 = arith.constant 0 : index
    %4 = vector.load %arg5[%c0_5, %c0_6] : memref<9x128xf32, #tpu.memory_space<vmem>>, vector<9x128xf32>
    %cst_7 = arith.constant dense<0.000000e+00> : vector<144x128xf32>
    %5 = tpu.matmul %3, %4, %cst_7 {dimension_numbers = #tpu.dot_dimension_numbers<[1], [0], [0], [1], [0, 0, 1, 1], [], []>} : vector<144x9xf32>, vector<9x128xf32>, vector<144x128xf32> -> vector<144x128xf32>
    %6 = arith.mulf %2, %5 : vector<144x128xf32>
    %c0_8 = arith.constant 0 : index
    %c0_9 = arith.constant 0 : index
    %7 = vector.load %arg3[%c0_8, %c0_9] : memref<9x144xf32, #tpu.memory_space<vmem>>, vector<9x144xf32>
    %cst_10 = arith.constant dense<0.000000e+00> : vector<9x128xf32>
    %8 = tpu.matmul %7, %6, %cst_10 {dimension_numbers = #tpu.dot_dimension_numbers<[1], [0], [0], [1], [0, 0, 1, 1], [], []>} : vector<9x144xf32>, vector<144x128xf32>, vector<9x128xf32> -> vector<9x128xf32>
    %c0_11 = arith.constant 0 : index
    %c0_12 = arith.constant 0 : index
    %9 = vector.load %arg6[%c0_11, %c0_12] : memref<9x128xf32, #tpu.memory_space<vmem>>, vector<9x128xf32>
    tpu.vector_store %arg6[%c0_11, %c0_12], %8 {strides = array<i32>} : memref<9x128xf32, #tpu.memory_space<vmem>>, vector<9x128xf32>,
    return
  }
  func.func @transform_0(%arg0: i32) -> (i32, i32) {
    %c0_i32 = arith.constant 0 : i32
    %c0_i32_0 = arith.constant 0 : i32
    %c0_i32_1 = arith.constant 0 : i32
    return %c0_i32, %c0_i32_0 : i32, i32
  }
  func.func @transform_1(%arg0: i32) -> (i32, i32) {
    %c0_i32 = arith.constant 0 : i32
    %c0_i32_0 = arith.constant 0 : i32
    %c0_i32_1 = arith.constant 0 : i32
    return %c0_i32, %c0_i32_0 : i32, i32
  }
  func.func @transform_2(%arg0: i32) -> (i32, i32) {
    %c0_i32 = arith.constant 0 : i32
    %c0_i32_0 = arith.constant 0 : i32
    %c0_i32_1 = arith.constant 0 : i32
    return %c0_i32, %c0_i32_0 : i32, i32
  }
  func.func @transform_3(%arg0: i32) -> (i32, i32) {
    %c0_i32 = arith.constant 0 : i32
    %c0_i32_0 = arith.constant 0 : i32
    return %c0_i32, %arg0 : i32, i32
  }
  func.func @transform_4(%arg0: i32) -> (i32, i32) {
    %c0_i32 = arith.constant 0 : i32
    %c0_i32_0 = arith.constant 0 : i32
    return %c0_i32, %arg0 : i32, i32
  }
  func.func @transform_5(%arg0: i32) -> (i32, i32) {
    %c0_i32 = arith.constant 0 : i32
    %c0_i32_0 = arith.constant 0 : i32
    return %c0_i32, %arg0 : i32, i32
  }
}

</mosaic_0001>

<llo_original>
// kernel: _tensor_product_cw_pallas.1
$region0: #{_tensor_product_cw_pallas.1}
  #allocation0 [shape = 'u32[]', space=smem, size = 0x4, offset = 0x4, fixed_abs, tag = 'smem constant byte address 0x4 - core index']
  #allocation1 [shape = 'u32[144,128]{1,0:T(1,128)}', space=vmem, size = 0x12000, scoped, tag = 'internal scratch']
  %s0 = inlined_call_operand.vmem [shape: f32[144,9], index: 0, kind: input, shape index: {}]
  %s1 = inlined_call_operand.vmem [shape: f32[144,9], index: 1, kind: input, shape index: {}]
  %s2 = inlined_call_operand.vmem [shape: f32[9,144], index: 2, kind: input, shape index: {}]
  %s3 = inlined_call_operand.vmem [shape: f32[9,128], index: 3, kind: input, shape index: {}]
  %s4 = inlined_call_operand.vmem [shape: f32[9,128], index: 4, kind: input, shape index: {}]
  %s5 = inlined_call_operand.vmem [shape: f32[9,128], index: 5, kind: output, shape index: {}]
  %s6 = sld [smem:[#allocation0]]
  $region30: #{_tensor_product_cw_pallas.1} parent=0
    _
  %s8 = ssub.s32 1, %s6
  %s9 = scalar_select 0, %s8, %s6
  // Predicated region
  $region2: #{_tensor_product_cw_pallas.1} parent=0 // pred_check
    _
  $region3: #{_tensor_product_cw_pallas.1} parent=0 // pred_check_branch
    %11 = sbr.rel (0) target = $region5
  $region4: #{_tensor_product_cw_pallas.1} parent=0 // pred_region
    _
  $region5: #{_tensor_product_cw_pallas.1} parent=0 // pred_fallthru
    _
  // Predicated region
  $region6: #{_tensor_product_cw_pallas.1} parent=0 // pred_check
    _
  $region7: #{_tensor_product_cw_pallas.1} parent=0 // pred_check_branch
    %13 = sbr.rel (0) target = $region9
  $region8: #{_tensor_product_cw_pallas.1} parent=0 // pred_region
    _
  $region9: #{_tensor_product_cw_pallas.1} parent=0 // pred_fallthru
    _
  // Predicated region
  $region10: #{_tensor_product_cw_pallas.1} parent=0 // pred_check
    _
  $region11: #{_tensor_product_cw_pallas.1} parent=0 // pred_check_branch
    %15 = sbr.rel (0) target = $region13
  $region12: #{_tensor_product_cw_pallas.1} parent=0 // pred_region
    _
  $region13: #{_tensor_product_cw_pallas.1} parent=0 // pred_fallthru
    _
  // Predicated region
  $region14: #{_tensor_product_cw_pallas.1} parent=0 // pred_check
    _
  $region15: #{_tensor_product_cw_pallas.1} parent=0 // pred_check_branch
    %17 = sbr.rel (0) target = $region17
  $region16: #{_tensor_product_cw_pallas.1} parent=0 // pred_region
    _
  $region17: #{_tensor_product_cw_pallas.1} parent=0 // pred_fallthru
    _
  // Predicated region
  $region18: #{_tensor_product_cw_pallas.1} parent=0 // pred_check
    _
  $region19: #{_tensor_product_cw_pallas.1} parent=0 // pred_check_branch
    %19 = sbr.rel (0) target = $region21
  $region20: #{_tensor_product_cw_pallas.1} parent=0 // pred_region
    _
  $region21: #{_tensor_product_cw_pallas.1} parent=0 // pred_fallthru
    _
  %v20 = vld [vmem:[%s0] sm:$0xff]
  %v21 = vld [vmem:[%s0 + $0x8] sm:$0xff]
  %v22 = vld [vmem:[%s0 + $0x10] sm:$0xff]
  %v23 = vld [vmem:[%s0 + $0x18] sm:$0xff]
  %v24 = vld [vmem:[%s0 + $0x20] sm:$0xff]
  %v25 = vld [vmem:[%s0 + $0x28] sm:$0xff]
  %v26 = vld [vmem:[%s0 + $0x30] sm:$0xff]
  %v27 = vld [vmem:[%s0 + $0x38] sm:$0xff]
  %v28 = vld [vmem:[%s0 + $0x40] sm:$0xff]
  %v29 = vld [vmem:[%s0 + $0x48] sm:$0xff]
  %v30 = vld [vmem:[%s0 + $0x50] sm:$0xff]
  %v31 = vld [vmem:[%s0 + $0x58] sm:$0xff]
  %v32 = vld [vmem:[%s0 + $0x60] sm:$0xff]
  %v33 = vld [vmem:[%s0 + $0x68] sm:$0xff]
  %v34 = vld [vmem:[%s0 + $0x70] sm:$0xff]
  %v35 = vld [vmem:[%s0 + $0x78] sm:$0xff]
  %v36 = vld [vmem:[%s0 + $0x80] sm:$0xff]
  %v37 = vld [vmem:[%s0 + $0x88] sm:$0xff]
  %v38 = vld [vmem:[%s3] sm:$0xff]
  %v39 = vld [vmem:[%s3 + $0x8] sm:$0x1]
  %vm40 = vcmask 72704
  %v42 = vsel %vm40, %v20, 0
  %v45 = vsel %vm40, %v21, 0
  %v48 = vsel %vm40, %v22, 0
  %v51 = vsel %vm40, %v23, 0
  %v54 = vsel %vm40, %v24, 0
  %v57 = vsel %vm40, %v25, 0
  %v60 = vsel %vm40, %v26, 0
  %v63 = vsel %vm40, %v27, 0
  %v66 = vsel %vm40, %v28, 0
  %v69 = vsel %vm40, %v29, 0
  %v72 = vsel %vm40, %v30, 0
  %v75 = vsel %vm40, %v31, 0
  %v78 = vsel %vm40, %v32, 0
  %v81 = vsel %vm40, %v33, 0
  %v84 = vsel %vm40, %v34, 0
  %v87 = vsel %vm40, %v35, 0
  %v90 = vsel %vm40, %v36, 0
  %v93 = vsel %vm40, %v37, 0
  %vm95 = vcmask 1040384
  %v97 = vsel %vm95, %v39, 0
  %99 = vmatprep.subr.mxu0 0.0
  %100 = vmatpush1.msra.mxu0 %v38
  %101 = vmatprep.subr.mxu0 0.0
  %102 = vmatpush1.msra.mxu0 %v97
  %103 = vmatprep.subr.mxu0 0.0
  %104 = vmatpush1.msra.mxu0 0.0
  %105 = vmatprep.subr.mxu0 0.0
  %106 = vmatpush1.msra.mxu0 0.0
  %107 = vmatprep.subr.mxu0 0.0
  %108 = vmatpush1.msra.mxu0 0.0
  %109 = vmatprep.subr.mxu0 0.0
  %110 = vmatpush1.msra.mxu0 0.0
  %111 = vmatprep.subr.mxu0 0.0
  %112 = vmatpush1.msra.mxu0 0.0
  %113 = vmatprep.subr.mxu0 0.0
  %114 = vmatpush1.msra.mxu0 0.0
  %115 = vmatprep.subr.mxu0 0.0
  %116 = vmatpush1.msra.mxu0 0.0
  %117 = vmatprep.subr.mxu0 0.0
  %118 = vmatpush1.msra.mxu0 0.0
  %119 = vmatprep.subr.mxu0 0.0
  %120 = vmatpush1.msra.mxu0 0.0
  %121 = vmatprep.subr.mxu0 0.0
  %122 = vmatpush1.msra.mxu0 0.0
  %123 = vmatprep.subr.mxu0 0.0
  %124 = vmatpush1.msra.mxu0 0.0
  %125 = vmatprep.subr.mxu0 0.0
  %126 = vmatpush1.msra.mxu0 0.0
  %127 = vmatprep.subr.mxu0 0.0
  %128 = vmatpush1.msra.mxu0 0.0
  %129 = vmatprep.subr.mxu0 0.0
  %130 = vmatpush1.msra.mxu0 0.0
  %131 = vmatprep.subr.mxu0 0.0
  %132 = vmatpush1.msra.mxu0 0.0
  %133 = vmatprep.subr.mxu0 0.0
  %134 = vmatpush1.msra.mxu0 0.0
  %135 = vmatprep.subr.mxu0 0.0
  %136 = vmatpush1.msra.mxu0 0.0
  %137 = vmatprep.subr.mxu0 0.0
  %138 = vmatpush1.msra.mxu0 0.0
  %139 = vmatprep.subr.mxu0 0.0
  %140 = vmatpush1.msra.mxu0 0.0
  %141 = vmatprep.subr.mxu0 0.0
  %142 = vmatpush1.msra.mxu0 0.0
  %143 = vmatprep.subr.mxu0 0.0
  %144 = vmatpush1.msra.mxu0 0.0
  %145 = vmatprep.subr.mxu0 0.0
  %146 = vmatpush1.msra.mxu0 0.0
  %147 = vmatprep.subr.mxu0 0.0
  %148 = vmatpush1.msra.mxu0 0.0
  %149 = vmatprep.subr.mxu0 0.0
  %150 = vmatpush1.msra.mxu0 0.0
  %151 = vmatprep.subr.mxu0 0.0
  %152 = vmatpush1.msra.mxu0 0.0
  %153 = vmatprep.subr.mxu0 0.0
  %154 = vmatpush1.msra.mxu0 0.0
  %155 = vmatprep.subr.mxu0 0.0
  %156 = vmatpush1.msra.mxu0 0.0
  %157 = vmatprep.subr.mxu0 0.0
  %158 = vmatpush1.msra.mxu0 0.0
  %159 = vmatprep.subr.mxu0 0.0
  %160 = vmatpush1.msra.mxu0 0.0
  %161 = vmatprep.subr.mxu0 0.0
  %162 = vmatpush1.msra.mxu0 0.0
  %163 = vmatprep.mubr.f32.mxu0 0.0
  %164 = vmatmul.mubr.f32.gmra.mrb[0].mxu0 %v42
  %v165 = vpop.f32.mrb[0].mxu0
  %v166 = vadd.f32 0.0, %v165
  %v167 = vpop.f32.mrb[0].mxu0
  %168 = vmatprep.mubr.f32.mxu0 0.0
  %169 = vmatmul.mubr.f32.gmra.mrb[0].mxu0 %v45
  %v170 = vpop.f32.mrb[0].mxu0
  %v171 = vadd.f32 0.0, %v170
  %v172 = vpop.f32.mrb[0].mxu0
  %173 = vmatprep.mubr.f32.mxu0 0.0
  %174 = vmatmul.mubr.f32.gmra.mrb[0].mxu0 %v48
  %v175 = vpop.f32.mrb[0].mxu0
  %v176 = vadd.f32 0.0, %v175
  %v177 = vpop.f32.mrb[0].mxu0
  %178 = vmatprep.mubr.f32.mxu0 0.0
  %179 = vmatmul.mubr.f32.gmra.mrb[0].mxu0 %v51
  %v180 = vpop.f32.mrb[0].mxu0
  %v181 = vadd.f32 0.0, %v180
  %v182 = vpop.f32.mrb[0].mxu0
  %183 = vmatprep.mubr.f32.mxu0 0.0
  %184 = vmatmul.mubr.f32.gmra.mrb[0].mxu0 %v54
  %v185 = vpop.f32.mrb[0].mxu0
  %v186 = vadd.f32 0.0, %v185
  %v187 = vpop.f32.mrb[0].mxu0
  %188 = vmatprep.mubr.f32.mxu0 0.0
  %189 = vmatmul.mubr.f32.gmra.mrb[0].mxu0 %v57
  %v190 = vpop.f32.mrb[0].mxu0
  %v191 = vadd.f32 0.0, %v190
  %v192 = vpop.f32.mrb[0].mxu0
  %193 = vmatprep.mubr.f32.mxu0 0.0
  %194 = vmatmul.mubr.f32.gmra.mrb[0].mxu0 %v60
  %v195 = vpop.f32.mrb[0].mxu0
  %v196 = vadd.f32 0.0, %v195
  %v197 = vpop.f32.mrb[0].mxu0
  %198 = vmatprep.mubr.f32.mxu0 0.0
  %199 = vmatmul.mubr.f32.gmra.mrb[0].mxu0 %v63
  %v200 = vpop.f32.mrb[0].mxu0
  %v201 = vadd.f32 0.0, %v200
  %v202 = vpop.f32.mrb[0].mxu0
  %203 = vmatprep.mubr.f32.mxu0 0.0
  %204 = vmatmul.mubr.f32.gmra.mrb[0].mxu0 %v66
  %v205 = vpop.f32.mrb[0].mxu0
  %v206 = vadd.f32 0.0, %v205
  %v207 = vpop.f32.mrb[0].mxu0
  %208 = vmatprep.mubr.f32.mxu0 0.0
  %209 = vmatmul.mubr.f32.gmra.mrb[0].mxu0 %v69
  %v210 = vpop.f32.mrb[0].mxu0
  %v211 = vadd.f32 0.0, %v210
  %v212 = vpop.f32.mrb[0].mxu0
  %213 = vmatprep.mubr.f32.mxu0 0.0
  %214 = vmatmul.mubr.f32.gmra.mrb[0].mxu0 %v72
  %v215 = vpop.f32.mrb[0].mxu0
  %v216 = vadd.f32 0.0, %v215
  %v217 = vpop.f32.mrb[0].mxu0
  %218 = vmatprep.mubr.f32.mxu0 0.0
  %219 = vmatmul.mubr.f32.gmra.mrb[0].mxu0 %v75
  %v220 = vpop.f32.mrb[0].mxu0
  %v221 = vadd.f32 0.0, %v220
  %v222 = vpop.f32.mrb[0].mxu0
  %223 = vmatprep.mubr.f32.mxu0 0.0
  %224 = vmatmul.mubr.f32.gmra.mrb[0].mxu0 %v78
  %v225 = vpop.f32.mrb[0].mxu0
  %v226 = vadd.f32 0.0, %v225
  %v227 = vpop.f32.mrb[0].mxu0
  %228 = vmatprep.mubr.f32.mxu0 0.0
  %229 = vmatmul.mubr.f32.gmra.mrb[0].mxu0 %v81
  %v230 = vpop.f32.mrb[0].mxu0
  %v231 = vadd.f32 0.0, %v230
  %v232 = vpop.f32.mrb[0].mxu0
  %233 = vmatprep.mubr.f32.mxu0 0.0
  %234 = vmatmul.mubr.f32.gmra.mrb[0].mxu0 %v84
  %v235 = vpop.f32.mrb[0].mxu0
  %v236 = vadd.f32 0.0, %v235
  %v237 = vpop.f32.mrb[0].mxu0
  %238 = vmatprep.mubr.f32.mxu0 0.0
  %239 = vmatmul.mubr.f32.gmra.mrb[0].mxu0 %v87
  %v240 = vpop.f32.mrb[0].mxu0
  %v241 = vadd.f32 0.0, %v240
  %v242 = vpop.f32.mrb[0].mxu0
  %243 = vmatprep.mubr.f32.mxu0 0.0
  %244 = vmatmul.mubr.f32.gmra.mrb[0].mxu0 %v90
  %v245 = vpop.f32.mrb[0].mxu0
  %v246 = vadd.f32 0.0, %v245
  %v247 = vpop.f32.mrb[0].mxu0
  %248 = vmatprep.mubr.f32.mxu0 0.0
  %249 = vmatmul.mubr.f32.gmra.mrb[0].mxu0 %v93
  %v250 = vpop.f32.mrb[0].mxu0
  %v251 = vadd.f32 0.0, %v250
  %v252 = vpop.f32.mrb[0].mxu0
  %253 = vdwg.mxu0
  %v254 = vld [vmem:[%s1] sm:$0xff]
  %v255 = vld [vmem:[%s1 + $0x8] sm:$0xff]
  %v256 = vld [vmem:[%s1 + $0x10] sm:$0xff]
  %v257 = vld [vmem:[%s1 + $0x18] sm:$0xff]
  %v258 = vld [vmem:[%s1 + $0x20] sm:$0xff]
  %v259 = vld [vmem:[%s1 + $0x28] sm:$0xff]
  %v260 = vld [vmem:[%s1 + $0x30] sm:$0xff]
  %v261 = vld [vmem:[%s1 + $0x38] sm:$0xff]
  %v262 = vld [vmem:[%s1 + $0x40] sm:$0xff]
  %v263 = vld [vmem:[%s1 + $0x48] sm:$0xff]
  %v264 = vld [vmem:[%s1 + $0x50] sm:$0xff]
  %v265 = vld [vmem:[%s1 + $0x58] sm:$0xff]
  %v266 = vld [vmem:[%s1 + $0x60] sm:$0xff]
  %v267 = vld [vmem:[%s1 + $0x68] sm:$0xff]
  %v268 = vld [vmem:[%s1 + $0x70] sm:$0xff]
  %v269 = vld [vmem:[%s1 + $0x78] sm:$0xff]
  %v270 = vld [vmem:[%s1 + $0x80] sm:$0xff]
  %v271 = vld [vmem:[%s1 + $0x88] sm:$0xff]
  %v272 = vld [vmem:[%s4] sm:$0xff]
  %v273 = vld [vmem:[%s4 + $0x8] sm:$0x1]
  %v275 = vsel %vm40, %v254, 0
  %v278 = vsel %vm40, %v255, 0
  %v281 = vsel %vm40, %v256, 0
  %v284 = vsel %vm40, %v257, 0
  %v287 = vsel %vm40, %v258, 0
  %v290 = vsel %vm40, %v259, 0
  %v293 = vsel %vm40, %v260, 0
  %v296 = vsel %vm40, %v261, 0
  %v299 = vsel %vm40, %v262, 0
  %v302 = vsel %vm40, %v263, 0
  %v305 = vsel %vm40, %v264, 0
  %v308 = vsel %vm40, %v265, 0
  %v311 = vsel %vm40, %v266, 0
  %v314 = vsel %vm40, %v267, 0
  %v317 = vsel %vm40, %v268, 0
  %v320 = vsel %vm40, %v269, 0
  %v323 = vsel %vm40, %v270, 0
  %v326 = vsel %vm40, %v271, 0
  %v329 = vsel %vm95, %v273, 0
  %331 = vmatprep.subr.mxu0 0.0
  %332 = vmatpush1.msra.mxu0 %v272
  %333 = vmatprep.subr.mxu0 0.0
  %334 = vmatpush1.msra.mxu0 %v329
  %335 = vmatprep.subr.mxu0 0.0
  %336 = vmatpush1.msra.mxu0 0.0
  %337 = vmatprep.subr.mxu0 0.0
  %338 = vmatpush1.msra.mxu0 0.0
  %339 = vmatprep.subr.mxu0 0.0
  %340 = vmatpush1.msra.mxu0 0.0
  %341 = vmatprep.subr.mxu0 0.0
  %342 = vmatpush1.msra.mxu0 0.0
  %343 = vmatprep.subr.mxu0 0.0
  %344 = vmatpush1.msra.mxu0 0.0
  %345 = vmatprep.subr.mxu0 0.0
  %346 = vmatpush1.msra.mxu0 0.0
  %347 = vmatprep.subr.mxu0 0.0
  %348 = vmatpush1.msra.mxu0 0.0
  %349 = vmatprep.subr.mxu0 0.0
  %350 = vmatpush1.msra.mxu0 0.0
  %351 = vmatprep.subr.mxu0 0.0
  %352 = vmatpush1.msra.mxu0 0.0
  %353 = vmatprep.subr.mxu0 0.0
  %354 = vmatpush1.msra.mxu0 0.0
  %355 = vmatprep.subr.mxu0 0.0
  %356 = vmatpush1.msra.mxu0 0.0
  %357 = vmatprep.subr.mxu0 0.0
  %358 = vmatpush1.msra.mxu0 0.0
  %359 = vmatprep.subr.mxu0 0.0
  %360 = vmatpush1.msra.mxu0 0.0
  %361 = vmatprep.subr.mxu0 0.0
  %362 = vmatpush1.msra.mxu0 0.0
  %363 = vmatprep.subr.mxu0 0.0
  %364 = vmatpush1.msra.mxu0 0.0
  %365 = vmatprep.subr.mxu0 0.0
  %366 = vmatpush1.msra.mxu0 0.0
  %367 = vmatprep.subr.mxu0 0.0
  %368 = vmatpush1.msra.mxu0 0.0
  %369 = vmatprep.subr.mxu0 0.0
  %370 = vmatpush1.msra.mxu0 0.0
  %371 = vmatprep.subr.mxu0 0.0
  %372 = vmatpush1.msra.mxu0 0.0
  %373 = vmatprep.subr.mxu0 0.0
  %374 = vmatpush1.msra.mxu0 0.0
  %375 = vmatprep.subr.mxu0 0.0
  %376 = vmatpush1.msra.mxu0 0.0
  %377 = vmatprep.subr.mxu0 0.0
  %378 = vmatpush1.msra.mxu0 0.0
  %379 = vmatprep.subr.mxu0 0.0
  %380 = vmatpush1.msra.mxu0 0.0
  %381 = vmatprep.subr.mxu0 0.0
  %382 = vmatpush1.msra.mxu0 0.0
  %383 = vmatprep.subr.mxu0 0.0
  %384 = vmatpush1.msra.mxu0 0.0
  %385 = vmatprep.subr.mxu0 0.0
  %386 = vmatpush1.msra.mxu0 0.0
  %387 = vmatprep.subr.mxu0 0.0
  %388 = vmatpush1.msra.mxu0 0.0
  %389 = vmatprep.subr.mxu0 0.0
  %390 = vmatpush1.msra.mxu0 0.0
  %391 = vmatprep.subr.mxu0 0.0
  %392 = vmatpush1.msra.mxu0 0.0
  %393 = vmatprep.subr.mxu0 0.0
  %394 = vmatpush1.msra.mxu0 0.0
  %395 = vmatprep.mubr.f32.mxu0 0.0
  %396 = vmatmul.mubr.f32.gmra.mrb[0].mxu0 %v275
  %v397 = vpop.f32.mrb[0].mxu0
  %v398 = vadd.f32 0.0, %v397
  %v399 = vpop.f32.mrb[0].mxu0
  %400 = vmatprep.mubr.f32.mxu0 0.0
  %401 = vmatmul.mubr.f32.gmra.mrb[0].mxu0 %v278
  %v402 = vpop.f32.mrb[0].mxu0
  %v403 = vadd.f32 0.0, %v402
  %v404 = vpop.f32.mrb[0].mxu0
  %405 = vmatprep.mubr.f32.mxu0 0.0
  %406 = vmatmul.mubr.f32.gmra.mrb[0].mxu0 %v281
  %v407 = vpop.f32.mrb[0].mxu0
  %v408 = vadd.f32 0.0, %v407
  %v409 = vpop.f32.mrb[0].mxu0
  %410 = vmatprep.mubr.f32.mxu0 0.0
  %411 = vmatmul.mubr.f32.gmra.mrb[0].mxu0 %v284
  %v412 = vpop.f32.mrb[0].mxu0
  %v413 = vadd.f32 0.0, %v412
  %v414 = vpop.f32.mrb[0].mxu0
  %415 = vmatprep.mubr.f32.mxu0 0.0
  %416 = vmatmul.mubr.f32.gmra.mrb[0].mxu0 %v287
  %v417 = vpop.f32.mrb[0].mxu0
  %v418 = vadd.f32 0.0, %v417
  %v419 = vpop.f32.mrb[0].mxu0
  %420 = vmatprep.mubr.f32.mxu0 0.0
  %421 = vmatmul.mubr.f32.gmra.mrb[0].mxu0 %v290
  %v422 = vpop.f32.mrb[0].mxu0
  %v423 = vadd.f32 0.0, %v422
  %v424 = vpop.f32.mrb[0].mxu0
  %425 = vmatprep.mubr.f32.mxu0 0.0
  %426 = vmatmul.mubr.f32.gmra.mrb[0].mxu0 %v293
  %v427 = vpop.f32.mrb[0].mxu0
  %v428 = vadd.f32 0.0, %v427
  %v429 = vpop.f32.mrb[0].mxu0
  %430 = vmatprep.mubr.f32.mxu0 0.0
  %431 = vmatmul.mubr.f32.gmra.mrb[0].mxu0 %v296
  %v432 = vpop.f32.mrb[0].mxu0
  %v433 = vadd.f32 0.0, %v432
  %v434 = vpop.f32.mrb[0].mxu0
  %435 = vmatprep.mubr.f32.mxu0 0.0
  %436 = vmatmul.mubr.f32.gmra.mrb[0].mxu0 %v299
  %v437 = vpop.f32.mrb[0].mxu0
  %v438 = vadd.f32 0.0, %v437
  %v439 = vpop.f32.mrb[0].mxu0
  %440 = vmatprep.mubr.f32.mxu0 0.0
  %441 = vmatmul.mubr.f32.gmra.mrb[0].mxu0 %v302
  %v442 = vpop.f32.mrb[0].mxu0
  %v443 = vadd.f32 0.0, %v442
  %v444 = vpop.f32.mrb[0].mxu0
  %445 = vmatprep.mubr.f32.mxu0 0.0
  %446 = vmatmul.mubr.f32.gmra.mrb[0].mxu0 %v305
  %v447 = vpop.f32.mrb[0].mxu0
  %v448 = vadd.f32 0.0, %v447
  %v449 = vpop.f32.mrb[0].mxu0
  %450 = vmatprep.mubr.f32.mxu0 0.0
  %451 = vmatmul.mubr.f32.gmra.mrb[0].mxu0 %v308
  %v452 = vpop.f32.mrb[0].mxu0
  %v453 = vadd.f32 0.0, %v452
  %v454 = vpop.f32.mrb[0].mxu0
  %455 = vmatprep.mubr.f32.mxu0 0.0
  %456 = vmatmul.mubr.f32.gmra.mrb[0].mxu0 %v311
  %v457 = vpop.f32.mrb[0].mxu0
  %v458 = vadd.f32 0.0, %v457
  %v459 = vpop.f32.mrb[0].mxu0
  %460 = vmatprep.mubr.f32.mxu0 0.0
  %461 = vmatmul.mubr.f32.gmra.mrb[0].mxu0 %v314
  %v462 = vpop.f32.mrb[0].mxu0
  %v463 = vadd.f32 0.0, %v462
  %v464 = vpop.f32.mrb[0].mxu0
  %465 = vmatprep.mubr.f32.mxu0 0.0
  %466 = vmatmul.mubr.f32.gmra.mrb[0].mxu0 %v317
  %v467 = vpop.f32.mrb[0].mxu0
  %v468 = vadd.f32 0.0, %v467
  %v469 = vpop.f32.mrb[0].mxu0
  %470 = vmatprep.mubr.f32.mxu0 0.0
  %471 = vmatmul.mubr.f32.gmra.mrb[0].mxu0 %v320
  %v472 = vpop.f32.mrb[0].mxu0
  %v473 = vadd.f32 0.0, %v472
  %v474 = vpop.f32.mrb[0].mxu0
  %475 = vmatprep.mubr.f32.mxu0 0.0
  %476 = vmatmul.mubr.f32.gmra.mrb[0].mxu0 %v323
  %v477 = vpop.f32.mrb[0].mxu0
  %v478 = vadd.f32 0.0, %v477
  %v479 = vpop.f32.mrb[0].mxu0
  %480 = vmatprep.mubr.f32.mxu0 0.0
  %481 = vmatmul.mubr.f32.gmra.mrb[0].mxu0 %v326
  %v482 = vpop.f32.mrb[0].mxu0
  %v483 = vadd.f32 0.0, %v482
  %v484 = vpop.f32.mrb[0].mxu0
  %485 = vdwg.mxu0
  %v486 = vmul.f32 %v166, %v398
  %v487 = vmul.f32 %v171, %v403
  %v488 = vmul.f32 %v176, %v408
  %v489 = vmul.f32 %v181, %v413
  %v490 = vmul.f32 %v186, %v418
  %v491 = vmul.f32 %v191, %v423
  %v492 = vmul.f32 %v196, %v428
  %v493 = vmul.f32 %v201, %v433
  %v494 = vmul.f32 %v206, %v438
  %v495 = vmul.f32 %v211, %v443
  %v496 = vmul.f32 %v216, %v448
  %v497 = vmul.f32 %v221, %v453
  %v498 = vmul.f32 %v226, %v458
  %v499 = vmul.f32 %v231, %v463
  %v500 = vmul.f32 %v236, %v468
  %v501 = vmul.f32 %v241, %v473
  %v502 = vmul.f32 %v246, %v478
  %v503 = vmul.f32 %v251, %v483
  %v504 = vld [vmem:[%s2] sm:$0xff]
  %v505 = vld [vmem:[%s2 + $0x8] sm:$0xff]
  %v506 = vld [vmem:[%s2 + $0x10] sm:$0x1]
  %v507 = vld [vmem:[%s2 + $0x18] sm:$0x1]
  %vm508 = vcmask 130048
  %v510 = vsel %vm508, %v505, 0
  %v513 = vsel %vm508, %v507, 0
  %515 = vmatprep.subr.mxu0 0.0
  %516 = vmatpush1.msra.mxu0 %v486
  %517 = vmatprep.subr.mxu0 0.0
  %518 = vmatpush1.msra.mxu0 %v487
  %519 = vmatprep.subr.mxu0 0.0
  %520 = vmatpush1.msra.mxu0 %v488
  %521 = vmatprep.subr.mxu0 0.0
  %522 = vmatpush1.msra.mxu0 %v489
  %523 = vmatprep.subr.mxu0 0.0
  %524 = vmatpush1.msra.mxu0 %v490
  %525 = vmatprep.subr.mxu0 0.0
  %526 = vmatpush1.msra.mxu0 %v491
  %527 = vmatprep.subr.mxu0 0.0
  %528 = vmatpush1.msra.mxu0 %v492
  %529 = vmatprep.subr.mxu0 0.0
  %530 = vmatpush1.msra.mxu0 %v493
  %531 = vmatprep.subr.mxu0 0.0
  %532 = vmatpush1.msra.mxu0 %v494
  %533 = vmatprep.subr.mxu0 0.0
  %534 = vmatpush1.msra.mxu0 %v495
  %535 = vmatprep.subr.mxu0 0.0
  %536 = vmatpush1.msra.mxu0 %v496
  %537 = vmatprep.subr.mxu0 0.0
  %538 = vmatpush1.msra.mxu0 %v497
  %539 = vmatprep.subr.mxu0 0.0
  %540 = vmatpush1.msra.mxu0 %v498
  %541 = vmatprep.subr.mxu0 0.0
  %542 = vmatpush1.msra.mxu0 %v499
  %543 = vmatprep.subr.mxu0 0.0
  %544 = vmatpush1.msra.mxu0 %v500
  %545 = vmatprep.subr.mxu0 0.0
  %546 = vmatpush1.msra.mxu0 %v501
  %547 = vmatprep.subr.mxu0 0.0
  %548 = vmatpush1.msra.mxu0 %v502
  %549 = vmatprep.subr.mxu0 0.0
  %550 = vmatpush1.msra.mxu0 %v503
  %551 = vmatprep.subr.mxu0 0.0
  %552 = vmatpush1.msra.mxu0 0.0
  %553 = vmatprep.subr.mxu0 0.0
  %554 = vmatpush1.msra.mxu0 0.0
  %555 = vmatprep.subr.mxu0 0.0
  %556 = vmatpush1.msra.mxu0 0.0
  %557 = vmatprep.subr.mxu0 0.0
  %558 = vmatpush1.msra.mxu0 0.0
  %559 = vmatprep.subr.mxu0 0.0
  %560 = vmatpush1.msra.mxu0 0.0
  %561 = vmatprep.subr.mxu0 0.0
  %562 = vmatpush1.msra.mxu0 0.0
  %563 = vmatprep.subr.mxu0 0.0
  %564 = vmatpush1.msra.mxu0 0.0
  %565 = vmatprep.subr.mxu0 0.0
  %566 = vmatpush1.msra.mxu0 0.0
  %567 = vmatprep.subr.mxu0 0.0
  %568 = vmatpush1.msra.mxu0 0.0
  %569 = vmatprep.subr.mxu0 0.0
  %570 = vmatpush1.msra.mxu0 0.0
  %571 = vmatprep.subr.mxu0 0.0
  %572 = vmatpush1.msra.mxu0 0.0
  %573 = vmatprep.subr.mxu0 0.0
  %574 = vmatpush1.msra.mxu0 0.0
  %575 = vmatprep.subr.mxu0 0.0
  %576 = vmatpush1.msra.mxu0 0.0
  %577 = vmatprep.subr.mxu0 0.0
  %578 = vmatpush1.msra.mxu0 0.0
  %579 = vmatprep.mubr.f32.mxu0 %v510
  %580 = vmatmul.mubr.f32.gmra.mrb[0].mxu0 %v504
  %v581 = vpop.f32.mrb[0].mxu0
  %v582 = vadd.f32 0.0, %v581
  %v583 = vpop.f32.mrb[0].mxu0
  %584 = vmatprep.mubr.f32.mxu0 %v513
  %585 = vmatmul.mubr.f32.gmra.mrb[0].mxu0 %v506
  %v586 = vpop.f32.mrb[0].mxu0
  %v587 = vadd.f32 0.0, %v586
  %v588 = vpop.f32.mrb[0].mxu0
  %589 = vdwg.mxu0
  %590 = vst [vmem:[%s5] sm:$0xff] %v582
  %591 = vst [vmem:[%s5 + $0x8] sm:$0x1] %v587
  // Predicated region
  $region22: #{_tensor_product_cw_pallas.1} parent=0 // pred_check
    _
  $region23: #{_tensor_product_cw_pallas.1} parent=0 // pred_check_branch
    %593 = sbr.rel (0) target = $region25
  $region24: #{_tensor_product_cw_pallas.1} parent=0 // pred_region
    _
  $region25: #{_tensor_product_cw_pallas.1} parent=0 // pred_fallthru
    _
  // Predicated region
  $region26: #{_tensor_product_cw_pallas.1} parent=0 // pred_check
    _
  $region27: #{_tensor_product_cw_pallas.1} parent=0 // pred_check_branch
    %595 = sbr.rel (0) target = $region29
  $region28: #{_tensor_product_cw_pallas.1} parent=0 // pred_region
    _
  $region29: #{_tensor_product_cw_pallas.1} parent=0 // pred_fallthru
    _

</llo_original>
